<compile_context>
chip_gen: v7x
topology: tpu7x:2x2x1
jax: 0.10.0
libtpu: 0.0.40
codegen_flags: <defaults>
</compile_context>

<pallas_src>
import functools

import jax
import jax.numpy as jnp
from jax.experimental import pallas as pl
from jax.experimental.pallas import tpu as pltpu


def _round_up(n, m):
    return ((n + m - 1) // m) * m


def _mlp_kernel(*refs, num_hidden: int):
    """Fused feature-major MLP: (Linear + ReLU) * num_hidden, then Linear(->1).

    Ref layout:
      refs[0]                    : x_t    [F0, TB]        stream dtype, batch on lanes
      refs[1+2k], refs[2+2k]     : W_k    [F_{k+1}, F_k]  stream dtype (PyTorch layout)
                                   b_k    [F_{k+1}, 1]    f32
      refs[-3], refs[-2]         : w_last [F_last, 1] f32, b_last [1, 1] f32
      refs[-1]                   : out    [1, TB]         f32, lane-dense row
    """
    x_ref = refs[0]
    o_ref = refs[-1]
    layer_refs = refs[1:-1]
    stream_dtype = x_ref.dtype

    h = x_ref[...]                                       # [F0, TB]
    for k in range(num_hidden):
        w = layer_refs[2 * k][...]                       # [Fout, Fin]  -> MXU
        b = layer_refs[2 * k + 1][...]                   # [Fout, 1]    -> lane broadcast
        # MXU matmul with f32 accumulation; bias add / ReLU stay in f32 (VPU).
        h = jnp.dot(w, h.astype(stream_dtype), preferred_element_type=jnp.float32)
        h = jnp.maximum(h + b, 0.0)                      # [Fout, TB] f32

    # Final Linear(F_last -> 1): VPU multiply + sublane (XLU) reduction instead
    # of a 1-row MXU matmul; the result is already a lane-dense [1, TB] row.
    w_last = layer_refs[2 * num_hidden][...]             # [F_last, 1] f32
    b_last = layer_refs[2 * num_hidden + 1][...]         # [1, 1] f32
    y = jnp.sum(h * w_last, axis=0, keepdims=True) + b_last
    o_ref[...] = y.astype(o_ref.dtype)


def regressor_forward(x, params, *, block_batch=8192, stream_dtype=None):
    """Forward pass of `Regressor` as a single fused Pallas kernel.

    x:            [batch, F0]
    params:       list of (W, b) in PyTorch layout, W: [out_features, in_features];
                  the last entry has out_features == 1.
    block_batch:  batch-tile width on the lane axis (multiple of 128).  Default
                  8192 keeps peak VMEM ~<10 MiB, safe on v5e/v6e and v7x (64 MiB);
                  sweep 4096..32768 (raise vmem_limit_bytes if you go larger).
    stream_dtype: dtype of the HBM-bound streams (x and hidden weights).
                  jnp.bfloat16 halves HBM traffic on v6e/v7x; accumulation,
                  bias add and ReLU remain f32.
    """
    if stream_dtype is None:
        stream_dtype = x.dtype
    batch, f0 = x.shape
    num_hidden = len(params) - 1
    assert block_batch % 128 == 0, "block_batch must be a multiple of 128"

    # Lane-dense batch tiling; pad so every batch size runs the tiled path.
    tb = min(block_batch, _round_up(batch, 128))
    padded = _round_up(batch, tb)
    n_tiles = padded // tb

    # Feature-major activations: x carried as [F0, B] so the x tile and the
    # output row are both lane-dense.
    x_t = jnp.pad(x.astype(stream_dtype).T, ((0, 0), (0, padded - batch)))

    inputs = [x_t]
    for k, (w, b) in enumerate(params):
        fout, fin = w.shape
        if k < num_hidden:
            inputs.append(w.astype(stream_dtype))                  # [Fout, Fin]
            inputs.append(b.reshape(fout, 1).astype(jnp.float32))  # [Fout, 1]
        else:
            # Final layer (fout == 1): pass the weight as an f32 column so the
            # kernel does a VPU multiply + sublane reduction.
            inputs.append(w.reshape(fin, 1).astype(jnp.float32))   # [F_last, 1]
            inputs.append(b.reshape(1, 1).astype(jnp.float32))     # [1, 1]

    # x streams per tile; deeper buffering hides residual DMA once the output
    # is lane-dense.  Weights/biases have a constant index_map -> fetched once
    # and VMEM-resident across the whole grid.
    x_kwargs = {}
    if n_tiles >= 3 and hasattr(pl, "Buffered"):
        x_kwargs["pipeline_mode"] = pl.Buffered(3)
    try:
        x_spec = pl.BlockSpec((f0, tb), lambda i: (0, i), **x_kwargs)
    except TypeError:  # older JAX without pipeline_mode: default double-buffer
        x_spec = pl.BlockSpec((f0, tb), lambda i: (0, i))

    in_specs = [x_spec]
    for arr in inputs[1:]:
        in_specs.append(pl.BlockSpec(arr.shape, lambda i: (0, 0)))

    out = pl.pallas_call(
        functools.partial(_mlp_kernel, num_hidden=num_hidden),
        out_shape=jax.ShapeDtypeStruct((1, padded), jnp.float32),
        grid=(n_tiles,),
        in_specs=in_specs,
        out_specs=pl.BlockSpec((1, tb), lambda i: (0, i)),
        compiler_params=pltpu.CompilerParams(
            # Independent batch tiles: v7x's two TensorCores split this axis;
            # neutral on single-TC chips.
            dimension_semantics=("parallel",),
        ),
    )(*inputs)

    # (1, padded) lane-dense row -> (batch, 1) column, dropping the pad.
    return out.reshape(-1)[:batch].reshape(batch, 1).astype(x.dtype)


def init_regressor_params(key, features):
    """Parameters matching the PyTorch module (W in PyTorch [out, in] layout).

    Layers: Linear(features[i], features[i+1]) for i in range(len(features)-1),
    then a final Linear(features[-1], 1).
    """
    dims = list(features) + [1]
    params = []
    for i in range(len(dims) - 1):
        fin, fout = dims[i], dims[i + 1]
        key, kw, kb = jax.random.split(key, 3)
        bound = float(fin) ** -0.5  # PyTorch's default Linear init bound
        w = jax.random.uniform(kw, (fout, fin), jnp.float32, -bound, bound)
        b = jax.random.uniform(kb, (fout,), jnp.float32, -bound, bound)
        params.append((w, b))
    return params


def regressor_reference(x, params, stream_dtype=jnp.float32):
    """Plain-JAX mirror: (Linear + ReLU)*(N-1), then Linear(->1).

    When stream_dtype != f32 it mirrors the kernel's HBM-stream quantization
    (x, hidden weights and pre-dot activations rounded; f32 accumulation).
    """
    rd = lambda a: a.astype(stream_dtype).astype(jnp.float32)
    h = rd(x)
    last = len(params) - 1
    for i, (w, b) in enumerate(params):
        if i < last:
            h = jnp.maximum(rd(h) @ rd(w).T + b, 0.0)
        else:
            h = h @ w.T + b
    return h


if __name__ == "__main__":
    key = jax.random.PRNGKey(0)
    kx, kp, kx2 = jax.random.split(key, 3)

    features = [32, 64, 32]          # Regressor(features): input dim = 32
    params = init_regressor_params(kp, features)

    # Tolerances leave headroom for MXU default-precision differences between
    # the Pallas dot and XLA's reference matmul (real bugs give O(1) errors).

    # 1) Small batch: single tile (batch padded up to 128 lanes).
    batch = 8
    x = jax.random.normal(kx, (batch, features[0]), jnp.float32)
    out = jax.block_until_ready(regressor_forward(x, params))
    assert out.shape == (batch, 1), out.shape
    ref = regressor_reference(x, params)
    assert jnp.allclose(out, ref, atol=5e-3, rtol=5e-3), \
        float(jnp.max(jnp.abs(out - ref)))

    # 2) Non-divisible batch on the tiled path: 1000 -> 4 tiles of 256,
    #    exercising padding, the "parallel" batch grid and Buffered(3) on x.
    big_batch = 1000
    xb = jax.random.normal(kx2, (big_batch, features[0]), jnp.float32)
    out_b = jax.block_until_ready(regressor_forward(xb, params, block_batch=256))
    assert out_b.shape == (big_batch, 1), out_b.shape
    ref_b = regressor_reference(xb, params)
    assert jnp.allclose(out_b, ref_b, atol=5e-3, rtol=5e-3), \
        float(jnp.max(jnp.abs(out_b - ref_b)))

    # 3) bf16 HBM stream (f32 accumulation) for v6e/v7x bandwidth headroom.
    out_bf = jax.block_until_ready(
        regressor_forward(xb, params, block_batch=256, stream_dtype=jnp.bfloat16))
    ref_bf = regressor_reference(xb, params, stream_dtype=jnp.bfloat16)
    assert jnp.allclose(out_bf, ref_bf, atol=1e-2, rtol=1e-2), \
        float(jnp.max(jnp.abs(out_bf - ref_bf)))

    print("KERNEL_OK")
</pallas_src>

<mosaic_0001>
module attributes {stable_mosaic.version = 11 : i64} {
  func.func @_mlp_kernel(%arg0: i32, %arg1: memref<32x128xf32, #tpu.memory_space<vmem>>, %arg2: memref<64x32xf32, #tpu.memory_space<vmem>>, %arg3: memref<64x1xf32, #tpu.memory_space<vmem>>, %arg4: memref<32x64xf32, #tpu.memory_space<vmem>>, %arg5: memref<32x1xf32, #tpu.memory_space<vmem>>, %arg6: memref<32x1xf32, #tpu.memory_space<vmem>>, %arg7: memref<1x1xf32, #tpu.memory_space<vmem>>, %arg8: memref<1x128xf32, #tpu.memory_space<vmem>>) attributes {dimension_semantics = [#tpu.dimension_semantics<parallel>], iteration_bounds = array<i64: 1>, scalar_prefetch = 0 : i64, scratch_operands = 0 : i64, tpu.core_type = #tpu.core_type<tc>, window_params = [{transform_indices = @transform_0, window_bounds = array<i64: 32, 128>}, {pipeline_mode = #tpu.pipeline_mode<synchronous>, transform_indices = @transform_1, window_bounds = array<i64: 64, 32>}, {pipeline_mode = #tpu.pipeline_mode<synchronous>, transform_indices = @transform_2, window_bounds = array<i64: 64, 1>}, {pipeline_mode = #tpu.pipeline_mode<synchronous>, transform_indices = @transform_3, window_bounds = array<i64: 32, 64>}, {pipeline_mode = #tpu.pipeline_mode<synchronous>, transform_indices = @transform_4, window_bounds = array<i64: 32, 1>}, {pipeline_mode = #tpu.pipeline_mode<synchronous>, transform_indices = @transform_5, window_bounds = array<i64: 32, 1>}, {pipeline_mode = #tpu.pipeline_mode<synchronous>, transform_indices = @transform_6, window_bounds = array<i64: 1, 1>}, {transform_indices = @transform_7, window_bounds = array<i64: 1, 128>}]} {
    %c0 = arith.constant 0 : index
    %c0_0 = arith.constant 0 : index
    %0 = vector.load %arg1[%c0, %c0_0] : memref<32x128xf32, #tpu.memory_space<vmem>>, vector<32x128xf32>
    %c0_1 = arith.constant 0 : index
    %c0_2 = arith.constant 0 : index
    %1 = vector.load %arg2[%c0_1, %c0_2] : memref<64x32xf32, #tpu.memory_space<vmem>>, vector<64x32xf32>
    %c0_3 = arith.constant 0 : index
    %c0_4 = arith.constant 0 : index
    %2 = vector.load %arg3[%c0_3, %c0_4] : memref<64x1xf32, #tpu.memory_space<vmem>>, vector<64x1xf32>
    %cst = arith.constant dense<0.000000e+00> : vector<64x128xf32>
    %3 = tpu.matmul %1, %0, %cst {dimension_numbers = #tpu.dot_dimension_numbers<[1], [0], [0], [1], [0, 0, 1, 1], [], []>} : vector<64x32xf32>, vector<32x128xf32>, vector<64x128xf32> -> vector<64x128xf32>
    %4 = vector.broadcast %2 : vector<64x1xf32> to vector<64x128xf32>
    %5 = arith.addf %3, %4 : vector<64x128xf32>
    %cst_5 = arith.constant 0.000000e+00 : f32
    %6 = vector.broadcast %cst_5 : f32 to vector<64x128xf32>
    %7 = arith.maximumf %5, %6 : vector<64x128xf32>
    %c0_6 = arith.constant 0 : index
    %c0_7 = arith.constant 0 : index
    %8 = vector.load %arg4[%c0_6, %c0_7] : memref<32x64xf32, #tpu.memory_space<vmem>>, vector<32x64xf32>
    %c0_8 = arith.constant 0 : index
    %c0_9 = arith.constant 0 : index
    %9 = vector.load %arg5[%c0_8, %c0_9] : memref<32x1xf32, #tpu.memory_space<vmem>>, vector<32x1xf32>
    %cst_10 = arith.constant dense<0.000000e+00> : vector<32x128xf32>
    %10 = tpu.matmul %8, %7, %cst_10 {dimension_numbers = #tpu.dot_dimension_numbers<[1], [0], [0], [1], [0, 0, 1, 1], [], []>} : vector<32x64xf32>, vector<64x128xf32>, vector<32x128xf32> -> vector<32x128xf32>
    %11 = vector.broadcast %9 : vector<32x1xf32> to vector<32x128xf32>
    %12 = arith.addf %10, %11 : vector<32x128xf32>
    %cst_11 = arith.constant 0.000000e+00 : f32
    %13 = vector.broadcast %cst_11 : f32 to vector<32x128xf32>
    %14 = arith.maximumf %12, %13 : vector<32x128xf32>
    %c0_12 = arith.constant 0 : index
    %c0_13 = arith.constant 0 : index
    %15 = vector.load %arg6[%c0_12, %c0_13] : memref<32x1xf32, #tpu.memory_space<vmem>>, vector<32x1xf32>
    %c0_14 = arith.constant 0 : index
    %c0_15 = arith.constant 0 : index
    %16 = vector.load %arg7[%c0_14, %c0_15] : memref<1x1xf32, #tpu.memory_space<vmem>>, vector<1x1xf32>
    %17 = vector.broadcast %15 : vector<32x1xf32> to vector<32x128xf32>
    %18 = arith.mulf %14, %17 : vector<32x128xf32>
    %cst_16 = arith.constant dense<0.000000e+00> : vector<128xf32>
    %19 = vector.multi_reduction <add>, %18, %cst_16 [0] : vector<32x128xf32> to vector<128xf32>
    %20 = vector.shape_cast %19 : vector<128xf32> to vector<1x128xf32>
    %21 = vector.broadcast %16 : vector<1x1xf32> to vector<1x128xf32>
    %22 = arith.addf %20, %21 : vector<1x128xf32>
    %c0_17 = arith.constant 0 : index
    %c0_18 = arith.constant 0 : index
    %23 = vector.load %arg8[%c0_17, %c0_18] : memref<1x128xf32, #tpu.memory_space<vmem>>, vector<1x128xf32>
    tpu.vector_store %arg8[%c0_17, %c0_18], %22 {strides = array<i32>} : memref<1x128xf32, #tpu.memory_space<vmem>>, vector<1x128xf32>,
    return
  }
  func.func @transform_0(%arg0: i32) -> (i32, i32) {
    %c0_i32 = arith.constant 0 : i32
    %c0_i32_0 = arith.constant 0 : i32
    return %c0_i32, %arg0 : i32, i32
  }
  func.func @transform_1(%arg0: i32) -> (i32, i32) {
    %c0_i32 = arith.constant 0 : i32
    %c0_i32_0 = arith.constant 0 : i32
    %c0_i32_1 = arith.constant 0 : i32
    return %c0_i32, %c0_i32_0 : i32, i32
  }
  func.func @transform_2(%arg0: i32) -> (i32, i32) {
    %c0_i32 = arith.constant 0 : i32
    %c0_i32_0 = arith.constant 0 : i32
    %c0_i32_1 = arith.constant 0 : i32
    return %c0_i32, %c0_i32_0 : i32, i32
  }
  func.func @transform_3(%arg0: i32) -> (i32, i32) {
    %c0_i32 = arith.constant 0 : i32
    %c0_i32_0 = arith.constant 0 : i32
    %c0_i32_1 = arith.constant 0 : i32
    return %c0_i32, %c0_i32_0 : i32, i32
  }
  func.func @transform_4(%arg0: i32) -> (i32, i32) {
    %c0_i32 = arith.constant 0 : i32
    %c0_i32_0 = arith.constant 0 : i32
    %c0_i32_1 = arith.constant 0 : i32
    return %c0_i32, %c0_i32_0 : i32, i32
  }
  func.func @transform_5(%arg0: i32) -> (i32, i32) {
    %c0_i32 = arith.constant 0 : i32
    %c0_i32_0 = arith.constant 0 : i32
    %c0_i32_1 = arith.constant 0 : i32
    return %c0_i32, %c0_i32_0 : i32, i32
  }
  func.func @transform_6(%arg0: i32) -> (i32, i32) {
    %c0_i32 = arith.constant 0 : i32
    %c0_i32_0 = arith.constant 0 : i32
    %c0_i32_1 = arith.constant 0 : i32
    return %c0_i32, %c0_i32_0 : i32, i32
  }
  func.func @transform_7(%arg0: i32) -> (i32, i32) {
    %c0_i32 = arith.constant 0 : i32
    %c0_i32_0 = arith.constant 0 : i32
    return %c0_i32, %arg0 : i32, i32
  }
}

</mosaic_0001>

<llo_original>
// kernel: tpu_custom_call.1
$region0: #{tpu_custom_call.1}
  #allocation0 [shape = 'u32[]', space=smem, size = 0x4, offset = 0x4, fixed_abs, tag = 'smem constant byte address 0x4 - core index']
  #allocation1 [shape = 'u32[144,128]{1,0:T(1,128)}', space=vmem, size = 0x12000, scoped, tag = 'internal scratch']
  #allocation2 [shape = 'f32[1,1]{1,0:T(1,128)S(1)}', space=vmem, size = 0x200, scoped, tag = 'scoped memory for tpu_custom_call.1']
  %s0 = inlined_call_operand.vmem [shape: f32[32,128], index: 0, kind: input, shape index: {}]
  %s1 = inlined_call_operand.vmem [shape: f32[64,32], index: 1, kind: input, shape index: {}]
  %s2 = inlined_call_operand.vmem [shape: f32[64,1], index: 2, kind: input, shape index: {}]
  %s3 = inlined_call_operand.vmem [shape: f32[32,64], index: 3, kind: input, shape index: {}]
  %s4 = inlined_call_operand.vmem [shape: f32[32,1], index: 4, kind: input, shape index: {}]
  %s5 = inlined_call_operand.vmem [shape: f32[32,1], index: 5, kind: input, shape index: {}]
  %s6 = inlined_call_operand.<no memory space> [shape: f32[1,1], index: 6, kind: input, shape index: {}]
  %s7 = inlined_call_operand.hbm [shape: f32[1,128], index: 7, kind: output, shape index: {}]
  %s8 = sld [smem:[#allocation0]]
  $region38: #{tpu_custom_call.1} parent=0
    _
  %s10 = ssub.s32 1, %s8
  %s11 = scalar_select 0, %s10, %s8
  %v12 = vstv %s6
  %13 = vst [vmem:[#allocation2] sm:$0x1] %v12
  $region1: #{tpu_custom_call.1} parent=0
    #allocation3 [shape = 'u8[512]{0}', space=vmem, size = 0x400, scoped, tag = 'output window, operand 0, single buffered']
    #allocation4 [shape = 's32[1]{0}', space=sflag, size = 0x4, scoped, tag = 'scoped memory for tpu_custom_call.1']
    %14 = vsyncpa [#allocation4], 0
    // Predicated region
    $region2: #{tpu_custom_call.1} parent=1 // pred_check
      _
    $region3: #{tpu_custom_call.1} parent=1 // pred_check_branch
      %16 = sbr.rel (0) target = $region5
    $region4: #{tpu_custom_call.1} parent=1 // pred_region
      _
    $region5: #{tpu_custom_call.1} parent=1 // pred_fallthru
      _
    // Predicated region
    $region6: #{tpu_custom_call.1} parent=1 // pred_check
      _
    $region7: #{tpu_custom_call.1} parent=1 // pred_check_branch
      %18 = sbr.rel (0) target = $region9
    $region8: #{tpu_custom_call.1} parent=1 // pred_region
      _
    $region9: #{tpu_custom_call.1} parent=1 // pred_fallthru
      _
    // Predicated region
    $region10: #{tpu_custom_call.1} parent=1 // pred_check
      _
    $region11: #{tpu_custom_call.1} parent=1 // pred_check_branch
      %20 = sbr.rel (0) target = $region13
    $region12: #{tpu_custom_call.1} parent=1 // pred_region
      _
    $region13: #{tpu_custom_call.1} parent=1 // pred_fallthru
      _
    // Predicated region
    $region14: #{tpu_custom_call.1} parent=1 // pred_check
      _
    $region15: #{tpu_custom_call.1} parent=1 // pred_check_branch
      %22 = sbr.rel (0) target = $region17
    $region16: #{tpu_custom_call.1} parent=1 // pred_region
      _
    $region17: #{tpu_custom_call.1} parent=1 // pred_fallthru
      _
    // Predicated region
    $region18: #{tpu_custom_call.1} parent=1 // pred_check
      _
    $region19: #{tpu_custom_call.1} parent=1 // pred_check_branch
      %24 = sbr.rel (0) target = $region21
    $region20: #{tpu_custom_call.1} parent=1 // pred_region
      _
    $region21: #{tpu_custom_call.1} parent=1 // pred_fallthru
      _
    // Predicated region
    $region22: #{tpu_custom_call.1} parent=1 // pred_check
      _
    $region23: #{tpu_custom_call.1} parent=1 // pred_check_branch
      %26 = sbr.rel (0) target = $region25
    $region24: #{tpu_custom_call.1} parent=1 // pred_region
      _
    $region25: #{tpu_custom_call.1} parent=1 // pred_fallthru
      _
    // Predicated region
    $region26: #{tpu_custom_call.1} parent=1 // pred_check
      _
    $region27: #{tpu_custom_call.1} parent=1 // pred_check_branch
      %28 = sbr.rel (0) target = $region29
    $region28: #{tpu_custom_call.1} parent=1 // pred_region
      _
    $region29: #{tpu_custom_call.1} parent=1 // pred_fallthru
      _
    %v29 = vld [vmem:[%s0] sm:$0xff]
    %v30 = vld [vmem:[%s0 + $0x8] sm:$0xff]
    %v31 = vld [vmem:[%s0 + $0x10] sm:$0xff]
    %v32 = vld [vmem:[%s0 + $0x18] sm:$0xff]
    %v33 = vld [vmem:[%s1] sm:$0xff]
    %v34 = vld [vmem:[%s1 + $0x8] sm:$0xff]
    %v35 = vld [vmem:[%s1 + $0x10] sm:$0xff]
    %v36 = vld [vmem:[%s1 + $0x18] sm:$0xff]
    %v37 = vld [vmem:[%s1 + $0x20] sm:$0xff]
    %v38 = vld [vmem:[%s1 + $0x28] sm:$0xff]
    %v39 = vld [vmem:[%s1 + $0x30] sm:$0xff]
    %v40 = vld [vmem:[%s1 + $0x38] sm:$0xff]
    %v41 = vld [vmem:[%s2] sm:$0xff]
    %v42 = vld [vmem:[%s2 + $0x8] sm:$0xff]
    %v43 = vld [vmem:[%s2 + $0x10] sm:$0xff]
    %v44 = vld [vmem:[%s2 + $0x18] sm:$0xff]
    %v45 = vld [vmem:[%s2 + $0x20] sm:$0xff]
    %v46 = vld [vmem:[%s2 + $0x28] sm:$0xff]
    %v47 = vld [vmem:[%s2 + $0x30] sm:$0xff]
    %v48 = vld [vmem:[%s2 + $0x38] sm:$0xff]
    %50 = vset.pattern.permute.xlu0 0
    %51 = vperm.xlu0 %50, %v41
    %v52 = vpop.permute.xlu0 %51
    %55 = vset.pattern.permute.xlu0 0
    %56 = vperm.xlu0 %55, %v42
    %v57 = vpop.permute.xlu0 %56
    %60 = vset.pattern.permute.xlu0 0
    %61 = vperm.xlu0 %60, %v43
    %v62 = vpop.permute.xlu0 %61
    %65 = vset.pattern.permute.xlu0 0
    %66 = vperm.xlu0 %65, %v44
    %v67 = vpop.permute.xlu0 %66
    %70 = vset.pattern.permute.xlu0 0
    %71 = vperm.xlu0 %70, %v45
    %v72 = vpop.permute.xlu0 %71
    %75 = vset.pattern.permute.xlu0 0
    %76 = vperm.xlu0 %75, %v46
    %v77 = vpop.permute.xlu0 %76
    %80 = vset.pattern.permute.xlu0 0
    %81 = vperm.xlu0 %80, %v47
    %v82 = vpop.permute.xlu0 %81
    %85 = vset.pattern.permute.xlu0 0
    %86 = vperm.xlu0 %85, %v48
    %v87 = vpop.permute.xlu0 %86
    %vm89 = vcmask 261120
    %v91 = vsel %vm89, %v33, 0
    %v94 = vsel %vm89, %v34, 0
    %v97 = vsel %vm89, %v35, 0
    %v100 = vsel %vm89, %v36, 0
    %v103 = vsel %vm89, %v37, 0
    %v106 = vsel %vm89, %v38, 0
    %v109 = vsel %vm89, %v39, 0
    %v112 = vsel %vm89, %v40, 0
    %114 = vmatprep.subr.mxu0 0.0
    %115 = vmatpush1.msra.mxu0 %v29
    %116 = vmatprep.subr.mxu0 0.0
    %117 = vmatpush1.msra.mxu0 %v30
    %118 = vmatprep.subr.mxu0 0.0
    %119 = vmatpush1.msra.mxu0 %v31
    %120 = vmatprep.subr.mxu0 0.0
    %121 = vmatpush1.msra.mxu0 %v32
    %122 = vmatprep.subr.mxu0 0.0
    %123 = vmatpush1.msra.mxu0 0.0
    %124 = vmatprep.subr.mxu0 0.0
    %125 = vmatpush1.msra.mxu0 0.0
    %126 = vmatprep.subr.mxu0 0.0
    %127 = vmatpush1.msra.mxu0 0.0
    %128 = vmatprep.subr.mxu0 0.0
    %129 = vmatpush1.msra.mxu0 0.0
    %130 = vmatprep.subr.mxu0 0.0
    %131 = vmatpush1.msra.mxu0 0.0
    %132 = vmatprep.subr.mxu0 0.0
    %133 = vmatpush1.msra.mxu0 0.0
    %134 = vmatprep.subr.mxu0 0.0
    %135 = vmatpush1.msra.mxu0 0.0
    %136 = vmatprep.subr.mxu0 0.0
    %137 = vmatpush1.msra.mxu0 0.0
    %138 = vmatprep.subr.mxu0 0.0
    %139 = vmatpush1.msra.mxu0 0.0
    %140 = vmatprep.subr.mxu0 0.0
    %141 = vmatpush1.msra.mxu0 0.0
    %142 = vmatprep.subr.mxu0 0.0
    %143 = vmatpush1.msra.mxu0 0.0
    %144 = vmatprep.subr.mxu0 0.0
    %145 = vmatpush1.msra.mxu0 0.0
    %146 = vmatprep.subr.mxu0 0.0
    %147 = vmatpush1.msra.mxu0 0.0
    %148 = vmatprep.subr.mxu0 0.0
    %149 = vmatpush1.msra.mxu0 0.0
    %150 = vmatprep.subr.mxu0 0.0
    %151 = vmatpush1.msra.mxu0 0.0
    %152 = vmatprep.subr.mxu0 0.0
    %153 = vmatpush1.msra.mxu0 0.0
    %154 = vmatprep.subr.mxu0 0.0
    %155 = vmatpush1.msra.mxu0 0.0
    %156 = vmatprep.subr.mxu0 0.0
    %157 = vmatpush1.msra.mxu0 0.0
    %158 = vmatprep.subr.mxu0 0.0
    %159 = vmatpush1.msra.mxu0 0.0
    %160 = vmatprep.subr.mxu0 0.0
    %161 = vmatpush1.msra.mxu0 0.0
    %162 = vmatprep.subr.mxu0 0.0
    %163 = vmatpush1.msra.mxu0 0.0
    %164 = vmatprep.subr.mxu0 0.0
    %165 = vmatpush1.msra.mxu0 0.0
    %166 = vmatprep.subr.mxu0 0.0
    %167 = vmatpush1.msra.mxu0 0.0
    %168 = vmatprep.subr.mxu0 0.0
    %169 = vmatpush1.msra.mxu0 0.0
    %170 = vmatprep.subr.mxu0 0.0
    %171 = vmatpush1.msra.mxu0 0.0
    %172 = vmatprep.subr.mxu0 0.0
    %173 = vmatpush1.msra.mxu0 0.0
    %174 = vmatprep.subr.mxu0 0.0
    %175 = vmatpush1.msra.mxu0 0.0
    %176 = vmatprep.subr.mxu0 0.0
    %177 = vmatpush1.msra.mxu0 0.0
    %178 = vmatprep.mubr.f32.mxu0 0.0
    %179 = vmatmul.mubr.f32.gmra.mrb[0].mxu0 %v91
    %v180 = vpop.f32.mrb[0].mxu0
    %v181 = vadd.f32 %v52, %v180
    %v182 = vpop.f32.mrb[0].mxu0
    %183 = vmatprep.mubr.f32.mxu0 0.0
    %184 = vmatmul.mubr.f32.gmra.mrb[0].mxu0 %v94
    %v185 = vpop.f32.mrb[0].mxu0
    %v186 = vadd.f32 %v57, %v185
    %v187 = vpop.f32.mrb[0].mxu0
    %188 = vmatprep.mubr.f32.mxu0 0.0
    %189 = vmatmul.mubr.f32.gmra.mrb[0].mxu0 %v97
    %v190 = vpop.f32.mrb[0].mxu0
    %v191 = vadd.f32 %v62, %v190
    %v192 = vpop.f32.mrb[0].mxu0
    %193 = vmatprep.mubr.f32.mxu0 0.0
    %194 = vmatmul.mubr.f32.gmra.mrb[0].mxu0 %v100
    %v195 = vpop.f32.mrb[0].mxu0
    %v196 = vadd.f32 %v67, %v195
    %v197 = vpop.f32.mrb[0].mxu0
    %198 = vmatprep.mubr.f32.mxu0 0.0
    %199 = vmatmul.mubr.f32.gmra.mrb[0].mxu0 %v103
    %v200 = vpop.f32.mrb[0].mxu0
    %v201 = vadd.f32 %v72, %v200
    %v202 = vpop.f32.mrb[0].mxu0
    %203 = vmatprep.mubr.f32.mxu0 0.0
    %204 = vmatmul.mubr.f32.gmra.mrb[0].mxu0 %v106
    %v205 = vpop.f32.mrb[0].mxu0
    %v206 = vadd.f32 %v77, %v205
    %v207 = vpop.f32.mrb[0].mxu0
    %208 = vmatprep.mubr.f32.mxu0 0.0
    %209 = vmatmul.mubr.f32.gmra.mrb[0].mxu0 %v109
    %v210 = vpop.f32.mrb[0].mxu0
    %v211 = vadd.f32 %v82, %v210
    %v212 = vpop.f32.mrb[0].mxu0
    %213 = vmatprep.mubr.f32.mxu0 0.0
    %214 = vmatmul.mubr.f32.gmra.mrb[0].mxu0 %v112
    %v215 = vpop.f32.mrb[0].mxu0
    %v216 = vadd.f32 %v87, %v215
    %v217 = vpop.f32.mrb[0].mxu0
    %218 = vdwg.mxu0
    %v219 = vmax.f32 %v181, 0.0
    %v220 = vmax.f32 %v186, 0.0
    %v221 = vmax.f32 %v191, 0.0
    %v222 = vmax.f32 %v196, 0.0
    %v223 = vmax.f32 %v201, 0.0
    %v224 = vmax.f32 %v206, 0.0
    %v225 = vmax.f32 %v211, 0.0
    %v226 = vmax.f32 %v216, 0.0
    %v227 = vld [vmem:[%s3] sm:$0xff]
    %v228 = vld [vmem:[%s3 + $0x8] sm:$0xff]
    %v229 = vld [vmem:[%s3 + $0x10] sm:$0xff]
    %v230 = vld [vmem:[%s3 + $0x18] sm:$0xff]
    %v231 = vld [vmem:[%s4] sm:$0xff]
    %v232 = vld [vmem:[%s4 + $0x8] sm:$0xff]
    %v233 = vld [vmem:[%s4 + $0x10] sm:$0xff]
    %v234 = vld [vmem:[%s4 + $0x18] sm:$0xff]
    %236 = vset.pattern.permute.xlu0 0
    %237 = vperm.xlu0 %236, %v231
    %v238 = vpop.permute.xlu0 %237
    %241 = vset.pattern.permute.xlu0 0
    %242 = vperm.xlu0 %241, %v232
    %v243 = vpop.permute.xlu0 %242
    %246 = vset.pattern.permute.xlu0 0
    %247 = vperm.xlu0 %246, %v233
    %v248 = vpop.permute.xlu0 %247
    %251 = vset.pattern.permute.xlu0 0
    %252 = vperm.xlu0 %251, %v234
    %v253 = vpop.permute.xlu0 %252
    %vm255 = vcmask 523264
    %v257 = vsel %vm255, %v227, 0
    %v260 = vsel %vm255, %v228, 0
    %v263 = vsel %vm255, %v229, 0
    %v266 = vsel %vm255, %v230, 0
    %268 = vmatprep.subr.mxu0 0.0
    %269 = vmatpush1.msra.mxu0 %v219
    %270 = vmatprep.subr.mxu0 0.0
    %271 = vmatpush1.msra.mxu0 %v220
    %272 = vmatprep.subr.mxu0 0.0
    %273 = vmatpush1.msra.mxu0 %v221
    %274 = vmatprep.subr.mxu0 0.0
    %275 = vmatpush1.msra.mxu0 %v222
    %276 = vmatprep.subr.mxu0 0.0
    %277 = vmatpush1.msra.mxu0 %v223
    %278 = vmatprep.subr.mxu0 0.0
    %279 = vmatpush1.msra.mxu0 %v224
    %280 = vmatprep.subr.mxu0 0.0
    %281 = vmatpush1.msra.mxu0 %v225
    %282 = vmatprep.subr.mxu0 0.0
    %283 = vmatpush1.msra.mxu0 %v226
    %284 = vmatprep.subr.mxu0 0.0
    %285 = vmatpush1.msra.mxu0 0.0
    %286 = vmatprep.subr.mxu0 0.0
    %287 = vmatpush1.msra.mxu0 0.0
    %288 = vmatprep.subr.mxu0 0.0
    %289 = vmatpush1.msra.mxu0 0.0
    %290 = vmatprep.subr.mxu0 0.0
    %291 = vmatpush1.msra.mxu0 0.0
    %292 = vmatprep.subr.mxu0 0.0
    %293 = vmatpush1.msra.mxu0 0.0
    %294 = vmatprep.subr.mxu0 0.0
    %295 = vmatpush1.msra.mxu0 0.0
    %296 = vmatprep.subr.mxu0 0.0
    %297 = vmatpush1.msra.mxu0 0.0
    %298 = vmatprep.subr.mxu0 0.0
    %299 = vmatpush1.msra.mxu0 0.0
    %300 = vmatprep.subr.mxu0 0.0
    %301 = vmatpush1.msra.mxu0 0.0
    %302 = vmatprep.subr.mxu0 0.0
    %303 = vmatpush1.msra.mxu0 0.0
    %304 = vmatprep.subr.mxu0 0.0
    %305 = vmatpush1.msra.mxu0 0.0
    %306 = vmatprep.subr.mxu0 0.0
    %307 = vmatpush1.msra.mxu0 0.0
    %308 = vmatprep.subr.mxu0 0.0
    %309 = vmatpush1.msra.mxu0 0.0
    %310 = vmatprep.subr.mxu0 0.0
    %311 = vmatpush1.msra.mxu0 0.0
    %312 = vmatprep.subr.mxu0 0.0
    %313 = vmatpush1.msra.mxu0 0.0
    %314 = vmatprep.subr.mxu0 0.0
    %315 = vmatpush1.msra.mxu0 0.0
    %316 = vmatprep.subr.mxu0 0.0
    %317 = vmatpush1.msra.mxu0 0.0
    %318 = vmatprep.subr.mxu0 0.0
    %319 = vmatpush1.msra.mxu0 0.0
    %320 = vmatprep.subr.mxu0 0.0
    %321 = vmatpush1.msra.mxu0 0.0
    %322 = vmatprep.subr.mxu0 0.0
    %323 = vmatpush1.msra.mxu0 0.0
    %324 = vmatprep.subr.mxu0 0.0
    %325 = vmatpush1.msra.mxu0 0.0
    %326 = vmatprep.subr.mxu0 0.0
    %327 = vmatpush1.msra.mxu0 0.0
    %328 = vmatprep.subr.mxu0 0.0
    %329 = vmatpush1.msra.mxu0 0.0
    %330 = vmatprep.subr.mxu0 0.0
    %331 = vmatpush1.msra.mxu0 0.0
    %332 = vmatprep.mubr.f32.mxu0 0.0
    %333 = vmatmul.mubr.f32.gmra.mrb[0].mxu0 %v257
    %v334 = vpop.f32.mrb[0].mxu0
    %v335 = vadd.f32 %v238, %v334
    %v336 = vpop.f32.mrb[0].mxu0
    %337 = vmatprep.mubr.f32.mxu0 0.0
    %338 = vmatmul.mubr.f32.gmra.mrb[0].mxu0 %v260
    %v339 = vpop.f32.mrb[0].mxu0
    %v340 = vadd.f32 %v243, %v339
    %v341 = vpop.f32.mrb[0].mxu0
    %342 = vmatprep.mubr.f32.mxu0 0.0
    %343 = vmatmul.mubr.f32.gmra.mrb[0].mxu0 %v263
    %v344 = vpop.f32.mrb[0].mxu0
    %v345 = vadd.f32 %v248, %v344
    %v346 = vpop.f32.mrb[0].mxu0
    %347 = vmatprep.mubr.f32.mxu0 0.0
    %348 = vmatmul.mubr.f32.gmra.mrb[0].mxu0 %v266
    %v349 = vpop.f32.mrb[0].mxu0
    %v350 = vadd.f32 %v253, %v349
    %v351 = vpop.f32.mrb[0].mxu0
    %352 = vdwg.mxu0
    %v353 = vmax.f32 %v335, 0.0
    %v354 = vmax.f32 %v340, 0.0
    %v355 = vmax.f32 %v345, 0.0
    %v356 = vmax.f32 %v350, 0.0
    %v357 = vld [vmem:[%s5] sm:$0xff]
    %v358 = vld [vmem:[%s5 + $0x8] sm:$0xff]
    %v359 = vld [vmem:[%s5 + $0x10] sm:$0xff]
    %v360 = vld [vmem:[%s5 + $0x18] sm:$0xff]
    %v361 = vld [vmem:[#allocation2] sm:$0x1]
    %363 = vset.pattern.permute.xlu0 0
    %364 = vperm.xlu0 %363, %v357
    %v365 = vpop.permute.xlu0 %364
    %368 = vset.pattern.permute.xlu0 0
    %369 = vperm.xlu0 %368, %v358
    %v370 = vpop.permute.xlu0 %369
    %373 = vset.pattern.permute.xlu0 0
    %374 = vperm.xlu0 %373, %v359
    %v375 = vpop.permute.xlu0 %374
    %378 = vset.pattern.permute.xlu0 0
    %379 = vperm.xlu0 %378, %v360
    %v380 = vpop.permute.xlu0 %379
    %v382 = vmul.f32 %v353, %v365
    %v383 = vmul.f32 %v354, %v370
    %v384 = vmul.f32 %v355, %v375
    %v385 = vmul.f32 %v356, %v380
    %v386 = vadd.f32 %v382, %v383
    %v387 = vadd.f32 %v386, %v384
    %v388 = vadd.f32 %v387, %v385
    %v389 = vrot.slane %v388, 4
    %v390 = vadd.f32 %v388, %v389
    %v391 = vrot.slane %v390, 2
    %v392 = vadd.f32 %v390, %v391
    %v393 = vrot.slane %v392, 1
    %v394 = vadd.f32 %v392, %v393
    %396 = vset.pattern.permute.xlu0 0
    %397 = vperm.xlu0 %396, %v361
    %v398 = vpop.permute.xlu0 %397
    %v400 = vlaneseq
    %v401 = vshrl.u32 %v400, 7
    %v402 = vsub.s32 0, %v401
    %v403 = vrot.slane %v398, %v402
    %v404 = vadd.f32 %v394, %v403
    %405 = vst [vmem:[#allocation3] sm:$0x1] %v404
    // Predicated region
    $region30: #{tpu_custom_call.1} parent=1 // pred_check
      _
    $region31: #{tpu_custom_call.1} parent=1 // pred_check_branch
      %407 = sbr.rel (0) target = $region33
    $region32: #{tpu_custom_call.1} parent=1 // pred_region
      %s409 = ssub.s32 16, 16
      %410 = vsyncadd [#allocation4], %s409
      %s412 = sshll.u32 [#allocation3], 4
      %s413 = int_to_ptr.vmem [resolvable:$true] %s412
      %415 = dma.vmem_to_hbm [thread:$0]  %s413, 16, %s7, [#allocation4]
    $region33: #{tpu_custom_call.1} parent=1 // pred_fallthru
      _
    // Predicated region
    $region34: #{tpu_custom_call.1} parent=1 // pred_check
      _
    $region35: #{tpu_custom_call.1} parent=1 // pred_check_branch
      %417 = sbr.rel (0) target = $region37
    $region36: #{tpu_custom_call.1} parent=1 // pred_region
      %418 = dma.done [#allocation4], 16
    $region37: #{tpu_custom_call.1} parent=1 // pred_fallthru
      _
    %419 = vsyncpa [#allocation4], 1

</llo_original>
